<compile_context>
chip_gen: v7x
topology: tpu7x:2x2x1
jax: 0.10.0
libtpu: 0.0.40
codegen_flags: <defaults>
</compile_context>

<pallas_src>
import functools

import jax
import jax.numpy as jnp
from jax.experimental import pallas as pl
from jax.experimental.pallas import tpu as pltpu

# Module hyper-parameters (CombinedFocalDiceLoss defaults).
ALPHA = 0.5      # combination weight AND focal alpha (module passes alpha to FocalLoss)
GAMMA = 2.0      # focal gamma
SMOOTH = 1e-6    # dice smoothing
EPS = 1e-6       # focal clamp epsilon

LANES = 128
SUBLANES = 8
MAX_TILE_ROWS = 2048   # 2048 x 128 f32 = 1 MiB per input tile; ~4 MiB in flight (2 in x 2 buf)


def _pow_gamma(x):
    # Integer gamma -> repeated multiply on the VPU instead of exp(g*log(x)) on the EUP.
    if float(GAMMA).is_integer() and GAMMA > 0:
        r = x
        for _ in range(int(GAMMA) - 1):
            r = r * x
        return r
    return x ** GAMMA  # fallback: non-integer gamma needs the transcendental path


def _combined_loss_kernel(pred_ref, target_ref, out_ref,
                          focal_acc, inter_acc, union_acc, *,
                          total_n, tile_rows, needs_mask):
    pid = pl.program_id(0)
    last = pl.num_programs(0) - 1

    @pl.when(pid == 0)
    def _init():
        focal_acc[...] = jnp.zeros_like(focal_acc)
        inter_acc[...] = jnp.zeros_like(inter_acc)
        union_acc[...] = jnp.zeros_like(union_acc)

    p = pred_ref[...].astype(jnp.float32)
    t = target_ref[...].astype(jnp.float32)

    # ---- Focal loss elementwise terms (clamped pred) ----
    pc = jnp.clip(p, EPS, 1.0 - EPS)
    one_m_pc = 1.0 - pc
    lp = jnp.log(pc)            # 2 EUP ops / element (unavoidable for general targets)
    lq = jnp.log(one_m_pc)
    # neg_bce = -(t*log(pc) + (1-t)*log(1-pc)); the sign flip is folded into finalize.
    neg_bce = lq + t * (lp - lq)

    if GAMMA == 2.0:
        # t*(1-pc)^2 + (1-t)*pc^2 == pc^2 + t*(1 - 2*pc)   (pure VPU, fewer ops)
        focal_w = pc * pc + t * (1.0 - 2.0 * pc)
    else:
        focal_w = t * _pow_gamma(one_m_pc) + (1.0 - t) * _pow_gamma(pc)

    if ALPHA == 0.5:
        # alpha weight t*0.5 + (1-t)*0.5 is a constant; fold it into the finalize scale.
        alpha_fold = 0.5
        focal_elem = focal_w * neg_bce
    else:
        alpha_fold = 1.0
        alpha_w = (1.0 - ALPHA) + t * (2.0 * ALPHA - 1.0)
        focal_elem = focal_w * alpha_w * neg_bce

    if needs_mask:
        # Zero-padded tail: exact for dice sums (p = t = 0); mask the focal term so the
        # mean divides over the true N only.
        row = jax.lax.broadcasted_iota(jnp.int32, (tile_rows, LANES), 0) + pid * tile_rows
        lane = jax.lax.broadcasted_iota(jnp.int32, (tile_rows, LANES), 1)
        valid = (row * LANES + lane) < total_n
        focal_elem = jnp.where(valid, focal_elem, 0.0)

    # VPU-only partial reduction: fold (tile_rows, 128) into a resident (8, 128) slab.
    def _fold(x):
        return x.reshape(tile_rows // SUBLANES, SUBLANES, LANES).sum(axis=0)

    focal_acc[...] += _fold(focal_elem)
    inter_acc[...] += _fold(p * t)
    union_acc[...] += _fold(p + t)

    @pl.when(pid == last)
    def _finalize():
        # Single cross-lane (XLU) reduction at the end of the grid.
        # Negative sign undoes the neg_bce folding; alpha_fold undoes the constant
        # alpha weight folding when ALPHA == 0.5.
        focal = jnp.sum(focal_acc[...]) * jnp.float32(-alpha_fold / total_n)
        intersection = jnp.sum(inter_acc[...])
        union = jnp.sum(union_acc[...])
        dice = (2.0 * intersection + SMOOTH) / (union + SMOOTH)
        dice_loss = 1.0 - dice
        out_ref[0, 0] = ALPHA * focal + (1.0 - ALPHA) * dice_loss


def combined_focal_dice_loss(pred: jax.Array, target: jax.Array,
                             *, max_tile_rows: int = MAX_TILE_ROWS) -> jax.Array:
    if pred.shape != target.shape:
        raise ValueError(
            f"Les formes de pred {pred.shape} et target {target.shape} doivent être identiques"
        )
    total = int(pred.size)
    rows = -(-total // LANES)                                        # ceil
    tile_rows = min(max_tile_rows, ((rows + SUBLANES - 1) // SUBLANES) * SUBLANES)
    grid = -(-rows // tile_rows)
    padded_rows = grid * tile_rows
    padded_total = padded_rows * LANES

    # Keep the HBM stream in the input dtype (e.g. bf16); upcast in-kernel.
    p_flat = pred.reshape(-1)
    t_flat = target.reshape(-1)
    if padded_total != total:
        p_flat = jnp.pad(p_flat, (0, padded_total - total))
        t_flat = jnp.pad(t_flat, (0, padded_total - total))
    p2 = p_flat.reshape(padded_rows, LANES)
    t2 = t_flat.reshape(padded_rows, LANES)

    kernel = functools.partial(
        _combined_loss_kernel,
        total_n=total,
        tile_rows=tile_rows,
        needs_mask=(padded_total != total),
    )

    out = pl.pallas_call(
        kernel,
        out_shape=jax.ShapeDtypeStruct((1, 1), jnp.float32),
        grid_spec=pltpu.PrefetchScalarGridSpec(
            num_scalar_prefetch=0,
            grid=(grid,),
            in_specs=[
                pl.BlockSpec((tile_rows, LANES), lambda i: (i, 0)),
                pl.BlockSpec((tile_rows, LANES), lambda i: (i, 0)),
            ],
            out_specs=pl.BlockSpec((1, 1), lambda i: (0, 0),
                                   memory_space=pltpu.MemorySpace.SMEM),
            scratch_shapes=[
                pltpu.VMEM((SUBLANES, LANES), jnp.float32),  # focal partial sums
                pltpu.VMEM((SUBLANES, LANES), jnp.float32),  # p*t partial sums
                pltpu.VMEM((SUBLANES, LANES), jnp.float32),  # p+t partial sums
            ],
        ),
        compiler_params=pltpu.CompilerParams(
            dimension_semantics=("arbitrary",),       # reduction axis with resident accumulators
            vmem_limit_bytes=32 << 20,                # safe on v5e (16 MiB default) and v7x (64 MiB phys)
        ),
    )(p2, t2)
    return out[0, 0]


def _reference_loss(pred, target):
    # Pure-JAX reference mirroring the PyTorch module.
    p = pred.astype(jnp.float32)
    t = target.astype(jnp.float32)
    pc = jnp.clip(p, EPS, 1.0 - EPS)
    bce = -t * jnp.log(pc) - (1.0 - t) * jnp.log(1.0 - pc)
    fw = t * (1.0 - pc) ** GAMMA + (1.0 - t) * pc ** GAMMA
    fw = fw * (t * ALPHA + (1.0 - t) * (1.0 - ALPHA))
    focal = jnp.mean(fw * bce)
    inter = jnp.sum(p * t)
    union = jnp.sum(p) + jnp.sum(t)
    dice = 1.0 - (2.0 * inter + SMOOTH) / (union + SMOOTH)
    return ALPHA * focal + (1.0 - ALPHA) * dice


if __name__ == "__main__":
    key = jax.random.PRNGKey(0)
    k_pred, k_tgt, k_pred2, k_tgt2 = jax.random.split(key, 4)

    # Main demo: NCHW probability maps, matches the PyTorch convention.
    B, C, H, W = 2, 4, 16, 16
    pred = jax.nn.sigmoid(jax.random.normal(k_pred, (B, C, H, W), dtype=jnp.float32))
    target = (jax.random.uniform(k_tgt, (B, C, H, W)) > 0.5).astype(jnp.float32)

    loss = jax.block_until_ready(combined_focal_dice_loss(pred, target))
    ref = jax.block_until_ready(_reference_loss(pred, target))
    assert jnp.allclose(loss, ref, atol=1e-5, rtol=1e-5), (loss, ref)

    # Second check: odd shape (not a multiple of 128) with a tiny tile to exercise the
    # multi-step grid, accumulator carry, zero-padding and focal mask paths.
    pred2 = jax.nn.sigmoid(jax.random.normal(k_pred2, (2, 3, 17, 19), dtype=jnp.float32))
    target2 = (jax.random.uniform(k_tgt2, (2, 3, 17, 19)) > 0.5).astype(jnp.float32)
    loss2 = jax.block_until_ready(
        combined_focal_dice_loss(pred2, target2, max_tile_rows=8))
    ref2 = jax.block_until_ready(_reference_loss(pred2, target2))
    assert jnp.allclose(loss2, ref2, atol=1e-5, rtol=1e-5), (loss2, ref2)

    print("KERNEL_OK")
</pallas_src>

<mosaic_0001>
module attributes {stable_mosaic.version = 11 : i64} {
  func.func @_combined_loss_kernel(%arg0: i32, %arg1: memref<16x128xf32, #tpu.memory_space<vmem>>, %arg2: memref<16x128xf32, #tpu.memory_space<vmem>>, %arg3: memref<1x1xf32, #tpu.memory_space<smem>>, %arg4: memref<8x128xf32, #tpu.memory_space<vmem>>, %arg5: memref<8x128xf32, #tpu.memory_space<vmem>>, %arg6: memref<8x128xf32, #tpu.memory_space<vmem>>) attributes {dimension_semantics = [#tpu.dimension_semantics<arbitrary>], iteration_bounds = array<i64: 1>, scalar_prefetch = 0 : i64, scratch_operands = 3 : i64, tpu.core_type = #tpu.core_type<tc>, window_params = [{transform_indices = @transform_0, window_bounds = array<i64: 16, 128>}, {transform_indices = @transform_1, window_bounds = array<i64: 16, 128>}, {transform_indices = @transform_2, window_bounds = array<i64: 1, 1>}]} {
    %c0_i32 = arith.constant 0 : i32
    %0 = arith.cmpi eq, %arg0, %c0_i32 : i32
    %1 = arith.extui %0 : i1 to i32
    %c0_i32_0 = arith.constant 0 : i32
    %2 = arith.cmpi ne, %1, %c0_i32_0 : i32
    scf.if %2 {
      %cst_25 = arith.constant 0.000000e+00 : f32
      %44 = vector.broadcast %cst_25 : f32 to vector<8x128xf32>
      %c0_26 = arith.constant 0 : index
      %c0_27 = arith.constant 0 : index
      %45 = vector.load %arg4[%c0_26, %c0_27] : memref<8x128xf32, #tpu.memory_space<vmem>>, vector<8x128xf32>
      tpu.vector_store %arg4[%c0_26, %c0_27], %44 {strides = array<i32>} : memref<8x128xf32, #tpu.memory_space<vmem>>, vector<8x128xf32>,
      %cst_28 = arith.constant 0.000000e+00 : f32
      %46 = vector.broadcast %cst_28 : f32 to vector<8x128xf32>
      %c0_29 = arith.constant 0 : index
      %c0_30 = arith.constant 0 : index
      %47 = vector.load %arg5[%c0_29, %c0_30] : memref<8x128xf32, #tpu.memory_space<vmem>>, vector<8x128xf32>
      tpu.vector_store %arg5[%c0_29, %c0_30], %46 {strides = array<i32>} : memref<8x128xf32, #tpu.memory_space<vmem>>, vector<8x128xf32>,
      %cst_31 = arith.constant 0.000000e+00 : f32
      %48 = vector.broadcast %cst_31 : f32 to vector<8x128xf32>
      %c0_32 = arith.constant 0 : index
      %c0_33 = arith.constant 0 : index
      %49 = vector.load %arg6[%c0_32, %c0_33] : memref<8x128xf32, #tpu.memory_space<vmem>>, vector<8x128xf32>
      tpu.vector_store %arg6[%c0_32, %c0_33], %48 {strides = array<i32>} : memref<8x128xf32, #tpu.memory_space<vmem>>, vector<8x128xf32>,
    } else {
    }
    %c0 = arith.constant 0 : index
    %c0_1 = arith.constant 0 : index
    %3 = vector.load %arg1[%c0, %c0_1] : memref<16x128xf32, #tpu.memory_space<vmem>>, vector<16x128xf32>
    %c0_2 = arith.constant 0 : index
    %c0_3 = arith.constant 0 : index
    %4 = vector.load %arg2[%c0_2, %c0_3] : memref<16x128xf32, #tpu.memory_space<vmem>>, vector<16x128xf32>
    %cst = arith.constant 9.99999997E-7 : f32
    %cst_4 = arith.constant 0.999998986 : f32
    %5 = vector.broadcast %cst : f32 to vector<16x128xf32>
    %6 = arith.maximumf %5, %3 : vector<16x128xf32>
    %7 = vector.broadcast %cst_4 : f32 to vector<16x128xf32>
    %8 = arith.minimumf %7, %6 : vector<16x128xf32>
    %cst_5 = arith.constant 1.000000e+00 : f32
    %9 = vector.broadcast %cst_5 : f32 to vector<16x128xf32>
    %10 = arith.subf %9, %8 : vector<16x128xf32>
    %11 = math.log %8 : vector<16x128xf32>
    %12 = math.log %10 : vector<16x128xf32>
    %13 = arith.subf %11, %12 : vector<16x128xf32>
    %14 = arith.mulf %4, %13 : vector<16x128xf32>
    %15 = arith.addf %12, %14 : vector<16x128xf32>
    %16 = arith.mulf %8, %8 : vector<16x128xf32>
    %cst_6 = arith.constant 2.000000e+00 : f32
    %17 = vector.broadcast %cst_6 : f32 to vector<16x128xf32>
    %18 = arith.mulf %17, %8 : vector<16x128xf32>
    %cst_7 = arith.constant 1.000000e+00 : f32
    %19 = vector.broadcast %cst_7 : f32 to vector<16x128xf32>
    %20 = arith.subf %19, %18 : vector<16x128xf32>
    %21 = arith.mulf %4, %20 : vector<16x128xf32>
    %22 = arith.addf %16, %21 : vector<16x128xf32>
    %23 = arith.mulf %22, %15 : vector<16x128xf32>
    %c0_8 = arith.constant 0 : index
    %c0_9 = arith.constant 0 : index
    %24 = vector.load %arg4[%c0_8, %c0_9] : memref<8x128xf32, #tpu.memory_space<vmem>>, vector<8x128xf32>
    %25 = vector.shape_cast %23 : vector<16x128xf32> to vector<2x8x128xf32>
    %cst_10 = arith.constant dense<0.000000e+00> : vector<8x128xf32>
    %26 = vector.multi_reduction <add>, %25, %cst_10 [0] : vector<2x8x128xf32> to vector<8x128xf32>
    %27 = arith.addf %24, %26 : vector<8x128xf32>
    %c0_11 = arith.constant 0 : index
    %c0_12 = arith.constant 0 : index
    %28 = vector.load %arg4[%c0_11, %c0_12] : memref<8x128xf32, #tpu.memory_space<vmem>>, vector<8x128xf32>
    tpu.vector_store %arg4[%c0_11, %c0_12], %27 {strides = array<i32>} : memref<8x128xf32, #tpu.memory_space<vmem>>, vector<8x128xf32>,
    %c0_13 = arith.constant 0 : index
    %c0_14 = arith.constant 0 : index
    %29 = vector.load %arg5[%c0_13, %c0_14] : memref<8x128xf32, #tpu.memory_space<vmem>>, vector<8x128xf32>
    %30 = arith.mulf %3, %4 : vector<16x128xf32>
    %31 = vector.shape_cast %30 : vector<16x128xf32> to vector<2x8x128xf32>
    %cst_15 = arith.constant dense<0.000000e+00> : vector<8x128xf32>
    %32 = vector.multi_reduction <add>, %31, %cst_15 [0] : vector<2x8x128xf32> to vector<8x128xf32>
    %33 = arith.addf %29, %32 : vector<8x128xf32>
    %c0_16 = arith.constant 0 : index
    %c0_17 = arith.constant 0 : index
    %34 = vector.load %arg5[%c0_16, %c0_17] : memref<8x128xf32, #tpu.memory_space<vmem>>, vector<8x128xf32>
    tpu.vector_store %arg5[%c0_16, %c0_17], %33 {strides = array<i32>} : memref<8x128xf32, #tpu.memory_space<vmem>>, vector<8x128xf32>,
    %c0_18 = arith.constant 0 : index
    %c0_19 = arith.constant 0 : index
    %35 = vector.load %arg6[%c0_18, %c0_19] : memref<8x128xf32, #tpu.memory_space<vmem>>, vector<8x128xf32>
    %36 = arith.addf %3, %4 : vector<16x128xf32>
    %37 = vector.shape_cast %36 : vector<16x128xf32> to vector<2x8x128xf32>
    %cst_20 = arith.constant dense<0.000000e+00> : vector<8x128xf32>
    %38 = vector.multi_reduction <add>, %37, %cst_20 [0] : vector<2x8x128xf32> to vector<8x128xf32>
    %39 = arith.addf %35, %38 : vector<8x128xf32>
    %c0_21 = arith.constant 0 : index
    %c0_22 = arith.constant 0 : index
    %40 = vector.load %arg6[%c0_21, %c0_22] : memref<8x128xf32, #tpu.memory_space<vmem>>, vector<8x128xf32>
    tpu.vector_store %arg6[%c0_21, %c0_22], %39 {strides = array<i32>} : memref<8x128xf32, #tpu.memory_space<vmem>>, vector<8x128xf32>,
    %c0_i32_23 = arith.constant 0 : i32
    %41 = arith.cmpi eq, %arg0, %c0_i32_23 : i32
    %42 = arith.extui %41 : i1 to i32
    %c0_i32_24 = arith.constant 0 : i32
    %43 = arith.cmpi ne, %42, %c0_i32_24 : i32
    scf.if %43 {
      %c0_25 = arith.constant 0 : index
      %c0_26 = arith.constant 0 : index
      %44 = vector.load %arg4[%c0_25, %c0_26] : memref<8x128xf32, #tpu.memory_space<vmem>>, vector<8x128xf32>
      %45 = vector.shape_cast %44 : vector<8x128xf32> to vector<1x8x128xf32>
      %cst_27 = arith.constant dense<0.000000e+00> : vector<1xf32>
      %46 = vector.multi_reduction <add>, %45, %cst_27 [1, 2] : vector<1x8x128xf32> to vector<1xf32>
      %47 = vector.shape_cast %46 : vector<1xf32> to vector<1x1x1xf32>
      %48 = vector.extract %47[0, 0, 0] : f32 from vector<1x1x1xf32>
      %cst_28 = arith.constant -2.44140625E-4 : f32
      %49 = arith.mulf %48, %cst_28 : f32
      %c0_29 = arith.constant 0 : index
      %c0_30 = arith.constant 0 : index
      %50 = vector.load %arg5[%c0_29, %c0_30] : memref<8x128xf32, #tpu.memory_space<vmem>>, vector<8x128xf32>
      %51 = vector.shape_cast %50 : vector<8x128xf32> to vector<1x8x128xf32>
      %cst_31 = arith.constant dense<0.000000e+00> : vector<1xf32>
      %52 = vector.multi_reduction <add>, %51, %cst_31 [1, 2] : vector<1x8x128xf32> to vector<1xf32>
      %53 = vector.shape_cast %52 : vector<1xf32> to vector<1x1x1xf32>
      %54 = vector.extract %53[0, 0, 0] : f32 from vector<1x1x1xf32>
      %c0_32 = arith.constant 0 : index
      %c0_33 = arith.constant 0 : index
      %55 = vector.load %arg6[%c0_32, %c0_33] : memref<8x128xf32, #tpu.memory_space<vmem>>, vector<8x128xf32>
      %56 = vector.shape_cast %55 : vector<8x128xf32> to vector<1x8x128xf32>
      %cst_34 = arith.constant dense<0.000000e+00> : vector<1xf32>
      %57 = vector.multi_reduction <add>, %56, %cst_34 [1, 2] : vector<1x8x128xf32> to vector<1xf32>
      %58 = vector.shape_cast %57 : vector<1xf32> to vector<1x1x1xf32>
      %59 = vector.extract %58[0, 0, 0] : f32 from vector<1x1x1xf32>
      %cst_35 = arith.constant 2.000000e+00 : f32
      %60 = arith.mulf %cst_35, %54 : f32
      %cst_36 = arith.constant 9.99999997E-7 : f32
      %61 = arith.addf %60, %cst_36 : f32
      %cst_37 = arith.constant 9.99999997E-7 : f32
      %62 = arith.addf %59, %cst_37 : f32
      %63 = arith.divf %61, %62 : f32
      %cst_38 = arith.constant 1.000000e+00 : f32
      %64 = arith.subf %cst_38, %63 : f32
      %cst_39 = arith.constant 5.000000e-01 : f32
      %65 = arith.mulf %cst_39, %49 : f32
      %cst_40 = arith.constant 5.000000e-01 : f32
      %66 = arith.mulf %cst_40, %64 : f32
      %67 = arith.addf %65, %66 : f32
      %c0_41 = arith.constant 0 : index
      %c0_42 = arith.constant 0 : index
      %68 = memref.load %arg3[%c0_41, %c0_42] : memref<1x1xf32, #tpu.memory_space<smem>>
      memref.store %67, %arg3[%c0_41, %c0_42] : memref<1x1xf32, #tpu.memory_space<smem>>
    } else {
    }
    return
  }
  func.func @transform_0(%arg0: i32) -> (i32, i32) {
    %c0_i32 = arith.constant 0 : i32
    %c0_i32_0 = arith.constant 0 : i32
    return %arg0, %c0_i32 : i32, i32
  }
  func.func @transform_1(%arg0: i32) -> (i32, i32) {
    %c0_i32 = arith.constant 0 : i32
    %c0_i32_0 = arith.constant 0 : i32
    return %arg0, %c0_i32 : i32, i32
  }
  func.func @transform_2(%arg0: i32) -> (i32, i32) {
    %c0_i32 = arith.constant 0 : i32
    %c0_i32_0 = arith.constant 0 : i32
    %c0_i32_1 = arith.constant 0 : i32
    return %c0_i32, %c0_i32_0 : i32, i32
  }
}

</mosaic_0001>

<llo_original>
// kernel: tpu_custom_call.1
$region0: #{tpu_custom_call.1}
  #allocation0 [shape = 'u32[]', space=smem, size = 0x4, offset = 0x4, fixed_abs, tag = 'smem constant byte address 0x4 - core index']
  #allocation1 [shape = 'u32[144,128]{1,0:T(1,128)}', space=vmem, size = 0x12000, scoped, tag = 'internal scratch']
  #allocation2 [shape = 'f32[8,128]{1,0:T(8,128)}', space=vmem, size = 0x1000, scoped, tag = 'scratch operand']
  #allocation3 [shape = 'f32[8,128]{1,0:T(8,128)}', space=vmem, size = 0x1000, scoped, tag = 'scratch operand']
  #allocation4 [shape = 'f32[8,128]{1,0:T(8,128)}', space=vmem, size = 0x1000, scoped, tag = 'scratch operand']
  %s0 = inlined_call_operand.hbm [shape: f32[16,128], index: 0, kind: input, shape index: {}]
  %s1 = inlined_call_operand.hbm [shape: f32[16,128], index: 1, kind: input, shape index: {}]
  %s2 = inlined_call_operand.hbm [shape: f32[1,1], index: 2, kind: output, shape index: {}]
  %s3 = sld [smem:[#allocation0]]
  $region34: #{tpu_custom_call.1} parent=0
    _
  %s5 = ssub.s32 1, %s3
  %s6 = scalar_select 0, %s5, %s3
  $region1: #{tpu_custom_call.1} parent=0
    #allocation5 [shape = 'u8[8192]{0}', space=vmem, size = 0x2000, scoped, tag = 'input window, operand 0, single buffered']
    #allocation6 [shape = 's32[1]{0}', space=sflag, size = 0x4, scoped, tag = 'scoped memory for tpu_custom_call.1']
    #allocation7 [shape = 's32[1]{0}', space=sflag, size = 0x4, scoped, tag = 'scoped memory for tpu_custom_call.1']
    #allocation8 [shape = 'u8[8192]{0}', space=vmem, size = 0x2000, scoped, tag = 'input window, operand 1, single buffered']
    #allocation9 [shape = 's32[1]{0}', space=sflag, size = 0x4, scoped, tag = 'scoped memory for tpu_custom_call.1']
    #allocation10 [shape = 'u8[512]{0}', space=smem, size = 0x200, scoped, tag = 'output window, operand 0, single buffered']
    %7 = vsyncpa [#allocation6], 0
    %8 = vsyncpa [#allocation9], 0
    %9 = vsyncpa [#allocation7], 0
    // Predicated region
    $region2: #{tpu_custom_call.1} parent=1 // pred_check
      _
    $region3: #{tpu_custom_call.1} parent=1 // pred_check_branch
      %11 = sbr.rel (0) target = $region5
    $region4: #{tpu_custom_call.1} parent=1 // pred_region
      %s13 = ssub.s32 256, 256
      %14 = vsyncadd [#allocation6], %s13
      %s15 = sshll.u32 [#allocation5], 4
      %s16 = int_to_ptr.vmem [resolvable:$true] %s15
      %21 = dma.hbm_to_vmem [thread:$0]  %s0, 256, %s16, [#allocation6], 128, 128, 8
    $region5: #{tpu_custom_call.1} parent=1 // pred_fallthru
      _
    // Predicated region
    $region6: #{tpu_custom_call.1} parent=1 // pred_check
      _
    $region7: #{tpu_custom_call.1} parent=1 // pred_check_branch
      %23 = sbr.rel (0) target = $region9
    $region8: #{tpu_custom_call.1} parent=1 // pred_region
      %s25 = ssub.s32 256, 256
      %26 = vsyncadd [#allocation9], %s25
      %s27 = sshll.u32 [#allocation8], 4
      %s28 = int_to_ptr.vmem [resolvable:$true] %s27
      %33 = dma.hbm_to_vmem [thread:$0]  %s1, 256, %s28, [#allocation9], 128, 128, 8
    $region9: #{tpu_custom_call.1} parent=1 // pred_fallthru
      _
    // Predicated region
    $region10: #{tpu_custom_call.1} parent=1 // pred_check
      _
    $region11: #{tpu_custom_call.1} parent=1 // pred_check_branch
      %35 = sbr.rel (0) target = $region13
    $region12: #{tpu_custom_call.1} parent=1 // pred_region
      %36 = dma.done [#allocation6], 256
    $region13: #{tpu_custom_call.1} parent=1 // pred_fallthru
      _
    // Predicated region
    $region14: #{tpu_custom_call.1} parent=1 // pred_check
      _
    $region15: #{tpu_custom_call.1} parent=1 // pred_check_branch
      %38 = sbr.rel (0) target = $region17
    $region16: #{tpu_custom_call.1} parent=1 // pred_region
      %39 = dma.done [#allocation9], 256
    $region17: #{tpu_custom_call.1} parent=1 // pred_fallthru
      _
    %p40 = scmp.eq.s32.totalorder 0, 0
    // Predicated region
    $region18: #{tpu_custom_call.1} parent=1 // pred_check
      %p41 = pneg %p40
    $region19: #{tpu_custom_call.1} parent=1 // pred_check_branch
      %43 = sbr.rel (%p41) target = $region21
    $region20: #{tpu_custom_call.1} parent=1 // pred_region
      %44 = vst [vmem:[#allocation2] sm:$0xff] 0.0
      %45 = vst [vmem:[#allocation3] sm:$0xff] 0.0
      %46 = vst [vmem:[#allocation4] sm:$0xff] 0.0
    $region21: #{tpu_custom_call.1} parent=1 // pred_fallthru
      _
    %v47 = vld [vmem:[#allocation5] sm:$0xff]
    %v48 = vld [vmem:[#allocation5 + $0x8] sm:$0xff]
    %v49 = vld [vmem:[#allocation8] sm:$0xff]
    %v50 = vld [vmem:[#allocation8 + $0x8] sm:$0xff]
    %v51 = vmax.f32 %v47, 1e-06
    %v52 = vmax.f32 %v48, 1e-06
    %v53 = vmin.f32 %v51, 0.999999
    %v54 = vmin.f32 %v52, 0.999999
    %v55 = vsub.f32 1.0, %v53
    %v56 = vsub.f32 1.0, %v54
    %v57 = vlog2.pop %v53
    %v58 = vmul.f32 %v57, 0.6931472
    %v59 = vlog2.pop %v54
    %v60 = vmul.f32 %v59, 0.6931472
    %v61 = vlog2.pop %v55
    %v62 = vmul.f32 %v61, 0.6931472
    %v63 = vlog2.pop %v56
    %v64 = vmul.f32 %v63, 0.6931472
    %v65 = vsub.f32 %v58, %v62
    %v66 = vsub.f32 %v60, %v64
    %v67 = vmul.f32 %v49, %v65
    %v68 = vmul.f32 %v50, %v66
    %v69 = vadd.f32 %v62, %v67
    %v70 = vadd.f32 %v64, %v68
    %v71 = vmul.f32 %v53, %v53
    %v72 = vmul.f32 %v54, %v54
    %v73 = vmul.f32 %v53, 2.0
    %v74 = vmul.f32 %v54, 2.0
    %v75 = vsub.f32 1.0, %v73
    %v76 = vsub.f32 1.0, %v74
    %v77 = vmul.f32 %v49, %v75
    %v78 = vmul.f32 %v50, %v76
    %v79 = vadd.f32 %v71, %v77
    %v80 = vadd.f32 %v72, %v78
    %v81 = vmul.f32 %v79, %v69
    %v82 = vmul.f32 %v80, %v70
    %v83 = vld [vmem:[#allocation2] sm:$0xff]
    %v84 = vadd.f32 %v81, %v82
    %v85 = vadd.f32 %v83, %v84
    %86 = vst [vmem:[#allocation2] sm:$0xff] %v85
    %v87 = vld [vmem:[#allocation3] sm:$0xff]
    %v88 = vmul.f32 %v47, %v49
    %v89 = vmul.f32 %v48, %v50
    %v90 = vadd.f32 %v88, %v89
    %v91 = vadd.f32 %v87, %v90
    %92 = vst [vmem:[#allocation3] sm:$0xff] %v91
    %v93 = vld [vmem:[#allocation4] sm:$0xff]
    %v94 = vadd.f32 %v47, %v49
    %v95 = vadd.f32 %v48, %v50
    %v96 = vadd.f32 %v94, %v95
    %v97 = vadd.f32 %v93, %v96
    %98 = vst [vmem:[#allocation4] sm:$0xff] %v97
    // Predicated region
    $region22: #{tpu_custom_call.1} parent=1 // pred_check
      %p99 = pneg %p40
    $region23: #{tpu_custom_call.1} parent=1 // pred_check_branch
      %101 = sbr.rel (%p99) target = $region25
    $region24: #{tpu_custom_call.1} parent=1 // pred_region
      %v102 = vld [vmem:[#allocation2] sm:$0xff]
      %103 = vadd.xlane.f32.xlu0 %v102
      %v104 = vpop.xlane.xlu0 %103
      %v105 = vrot.slane %v104, 4
      %v106 = vadd.f32 %v104, %v105
      %v107 = vrot.slane %v106, 2
      %v108 = vadd.f32 %v106, %v107
      %v109 = vrot.slane %v108, 1
      %v110 = vadd.f32 %v108, %v109
      %s111 = vtos %v110
      %s112 = smul.f32 %s111, -0.00024414063
      %v113 = vld [vmem:[#allocation3] sm:$0xff]
      %114 = vadd.xlane.f32.xlu0 %v113
      %v115 = vpop.xlane.xlu0 %114
      %v116 = vrot.slane %v115, 4
      %v117 = vadd.f32 %v115, %v116
      %v118 = vrot.slane %v117, 2
      %v119 = vadd.f32 %v117, %v118
      %v120 = vrot.slane %v119, 1
      %v121 = vadd.f32 %v119, %v120
      %s122 = vtos %v121
      %v123 = vld [vmem:[#allocation4] sm:$0xff]
      %124 = vadd.xlane.f32.xlu0 %v123
      %v125 = vpop.xlane.xlu0 %124
      %v126 = vrot.slane %v125, 4
      %v127 = vadd.f32 %v125, %v126
      %v128 = vrot.slane %v127, 2
      %v129 = vadd.f32 %v127, %v128
      %v130 = vrot.slane %v129, 1
      %v131 = vadd.f32 %v129, %v130
      %s132 = vtos %v131
      %s133 = smul.f32 %s122, 2.0
      %s134 = sadd.f32 %s133, 1e-06
      %s135 = sadd.f32 %s132, 1e-06
      %v136 = vstv %s135
      %v137 = vrcp.pop %v136
      %s138 = vtos %v137
      %s139 = smul.f32 %s134, %s138
      %s140 = ssub.f32 1.0, %s139
      %s141 = smul.f32 %s112, 0.5
      %s142 = smul.f32 %s140, 0.5
      %s143 = sadd.f32 %s141, %s142
      %s144 = scalar_lea.smem [#allocation10], 0
      %145 = sst [smem:[%s144]] %s143
    $region25: #{tpu_custom_call.1} parent=1 // pred_fallthru
      _
    // Predicated region
    $region26: #{tpu_custom_call.1} parent=1 // pred_check
      _
    $region27: #{tpu_custom_call.1} parent=1 // pred_check_branch
      %147 = sbr.rel (0) target = $region29
    $region28: #{tpu_custom_call.1} parent=1 // pred_region
      %s149 = ssub.s32 16, 16
      %150 = vsyncadd [#allocation7], %s149
      %153 = dma.smem_to_hbm [#allocation10], 16, %s2, [#allocation7]
    $region29: #{tpu_custom_call.1} parent=1 // pred_fallthru
      _
    // Predicated region
    $region30: #{tpu_custom_call.1} parent=1 // pred_check
      _
    $region31: #{tpu_custom_call.1} parent=1 // pred_check_branch
      %155 = sbr.rel (0) target = $region33
    $region32: #{tpu_custom_call.1} parent=1 // pred_region
      %156 = dma.done [#allocation7], 16
    $region33: #{tpu_custom_call.1} parent=1 // pred_fallthru
      _
    %157 = sfence
    %158 = vsyncpa [#allocation6], 1
    %159 = vsyncpa [#allocation9], 1
    %160 = vsyncpa [#allocation7], 1

</llo_original>
